<compile_context>
chip_gen: v5e
topology: v5e:2x2
jax: 0.10.0
libtpu: 0.0.40
codegen_flags: <defaults>
</compile_context>

<pallas_src>
import functools

import jax
import jax.numpy as jnp
from jax import lax
from jax.experimental import pallas as pl
from jax.experimental.pallas import tpu as pltpu

_SQRT3 = 3.0 ** 0.5
_SQRT5 = 5.0 ** 0.5


def _matern_body(nu, epsilon, add_eps, params_ref, t1_ref, t2_ref, out_ref):
    """One (TB, TN, TM) output block.

    params_ref: SMEM f32[2] = [variance (sigma^2), coef (= sqrt(c)/lengthscale)]
    t1_ref:     VMEM (TB, TN, 1)
    t2_ref:     VMEM (TB, 1, TM)
    out_ref:    VMEM (TB, TN, TM)
    """
    _, tn, tm = out_ref.shape

    var = params_ref[0]
    coef = params_ref[1]

    d = jnp.abs(t1_ref[...] - t2_ref[...])            # (TB, TN, TM)
    a = d * coef                                      # scaled distance
    e = jnp.exp(-a)                                   # EUP

    if nu == 0.5:
        k = var * e
    elif nu == 1.5:
        k = var * ((1.0 + a) * e)
    elif nu == 2.5:
        # 1 + a + (5 d^2)/(3 ls^2) == 1 + a + a^2/3  (Horner form).
        k = var * ((1.0 + a * (1.0 + a * (1.0 / 3.0))) * e)
    else:
        raise ValueError("nu must be one of [0.5, 1.5, 2.5]")

    if not add_eps:
        out_ref[...] = k.astype(out_ref.dtype)
        return

    # epsilon * I: only block-diagonal tiles can contain r == c elements.
    row0 = pl.program_id(1) * tn
    col0 = pl.program_id(2) * tm
    has_diag = jnp.logical_and(row0 < col0 + tm, col0 < row0 + tn)

    @pl.when(has_diag)
    def _():
        # (col_index - row_index) within the tile is a fixed pattern for a
        # fixed tile shape; one runtime int compare against a scalar offset.
        diff = (lax.broadcasted_iota(jnp.int32, (tn, tm), 1)
                - lax.broadcasted_iota(jnp.int32, (tn, tm), 0))
        jitter = jnp.where(diff == (row0 - col0),
                           jnp.float32(epsilon), jnp.float32(0.0))
        out_ref[...] = (k + jitter).astype(out_ref.dtype)   # single store

    @pl.when(jnp.logical_not(has_diag))
    def _():
        out_ref[...] = k.astype(out_ref.dtype)               # single store


def _matern_pallas(params, t1b, t2b, *, nu, epsilon, add_eps,
                   tn=512, tm=2048, tb=None,
                   target_tile_bytes=4 * 1024 * 1024):
    """params: f32[2] = [variance, coef]; t1b: (B, N); t2b: (B, M)
       -> (B, N, M) Matern matrix."""
    B, N = t1b.shape
    M = t2b.shape[1]

    # Lane-dense tiles: TM multiple of 128, TN multiple of 8 (or full extent
    # when the problem is smaller than one tile).
    tn = min(tn, N)
    tm = min(tm, M)
    if tn < N and tn % 8 != 0:
        raise ValueError("tn must be a multiple of 8 (or >= N)")
    if tm < M and tm % 128 != 0:
        raise ValueError("tm must be a multiple of 128 (or >= M)")

    # Batch blocking: pack TB batches per grid step so each output block is
    # ~target_tile_bytes (amortizes per-step overhead when N*M is small).
    if tb is None:
        tile_bytes = tn * tm * jnp.dtype(t1b.dtype).itemsize
        tb = int(max(1, min(B, target_tile_bytes // max(tile_bytes, 1))))
    tb = min(tb, B)

    grid = (pl.cdiv(B, tb), pl.cdiv(N, tn), pl.cdiv(M, tm))
    body = functools.partial(_matern_body, nu, epsilon, add_eps)

    return pl.pallas_call(
        body,
        out_shape=jax.ShapeDtypeStruct((B, N, M), t1b.dtype),
        grid=grid,
        in_specs=[
            # [variance, coef] scalars in SMEM (full array every step).
            pl.BlockSpec((2,), lambda b, i, j: (0,),
                         memory_space=pltpu.MemorySpace.SMEM),
            # t1 column slice (TB, TN, 1).
            pl.BlockSpec((tb, tn, 1), lambda b, i, j: (b, i, 0)),
            # t2 row slice (TB, 1, TM).
            pl.BlockSpec((tb, 1, tm), lambda b, i, j: (b, 0, j)),
        ],
        out_specs=pl.BlockSpec((tb, tn, tm), lambda b, i, j: (b, i, j)),
        compiler_params=pltpu.CompilerParams(
            dimension_semantics=("parallel", "parallel", "parallel"),
            vmem_limit_bytes=32 * 1024 * 1024,
        ),
    )(params, t1b.reshape(B, N, 1), t2b.reshape(B, 1, M))


class MaternKernel:
    """JAX/Pallas re-implementation of the PyTorch MaternKernel module."""

    def __init__(self, nu, lengthscale=1.0, sigma=1.0, epsilon=0.001):
        if nu not in [0.5, 1.5, 2.5]:
            raise ValueError("MaternKernel: nu must be one of [0.5, 1.5, 2.5]")
        self.nu = nu
        # Deterministic parameter init (matches nn.Parameter(torch.tensor(x))).
        self.lengthscale = jnp.float32(lengthscale)
        self.sigma = jnp.float32(sigma)
        self.epsilon = float(epsilon)

    def _pack_params(self):
        """Precompute derived scalars: [variance, sqrt(c_nu)/lengthscale]."""
        inv_ls = 1.0 / self.lengthscale
        var = self.sigma * self.sigma
        if self.nu == 0.5:
            coef = inv_ls
        elif self.nu == 1.5:
            coef = _SQRT3 * inv_ls
        else:
            coef = _SQRT5 * inv_ls
        return jnp.stack([var, coef]).astype(jnp.float32)

    def forward(self, t1, t2, equal=None):
        assert t1.ndim == t2.ndim, (
            "Matern Kernel object : Input tensors must have the same number of "
            "dimensions")

        # torch.equal semantics: same shape AND same values.  The value check
        # needs a device->host sync; callers running under jax.jit should pass
        # `equal=` explicitly (or the same array object for t1 and t2, which
        # short-circuits without any sync).
        if equal is None:
            if t1 is t2:
                equal = True
            elif t1.shape != t2.shape:
                equal = False
            else:
                try:
                    equal = bool(jnp.array_equal(t1, t2))
                except jax.errors.ConcretizationTypeError:
                    equal = False   # tracing: cannot compare values

        N = t1.shape[-1]
        M = t2.shape[-1]
        batch_shape = t1.shape[:-1]
        # NOTE: PyTorch-style broadcasting of *mismatched* leading batch dims
        # is not supported; leading dims of t1 and t2 must match (GP-VAE use).
        t1b = t1.reshape((-1, N)) if t1.ndim > 1 else t1.reshape((1, N))
        t2b = t2.reshape((-1, M)) if t2.ndim > 1 else t2.reshape((1, M))

        params = self._pack_params()

        k = _matern_pallas(params, t1b.astype(jnp.float32),
                           t2b.astype(jnp.float32),
                           nu=self.nu, epsilon=self.epsilon, add_eps=equal)

        # Reshape back to (..., N, M) matching the PyTorch broadcasting.
        if t1.ndim == 1:
            k = k.reshape((N, M))
        else:
            k = k.reshape(batch_shape + (N, M))

        if equal:
            # TODO(synk): Cholesky is a sequential triangular factorization
            # with no clean Pallas TPU equivalent; done in plain JAX here.
            L = jnp.linalg.cholesky(k)
            try:
                failed = bool(jnp.any(jnp.isnan(L)))
            except jax.errors.ConcretizationTypeError:
                failed = False   # under jit: skip host-side check
            if failed:
                raise NameError(
                    "Cholesky decomposition of a supposedly PSD kernel matrix "
                    "failed in Matern Kernel. Tolerance epsilon is likely too "
                    "low.")
            return k, L
        return k, None

    def __call__(self, t1, t2, equal=None):
        return self.forward(t1, t2, equal=equal)


if __name__ == "__main__":
    key = jax.random.PRNGKey(0)
    k1, k2 = jax.random.split(key)

    def ref_matern(a, b, nu, ls, sg):
        d = jnp.abs(a[..., :, None] - b[..., None, :])
        if nu == 0.5:
            return sg ** 2 * jnp.exp(-d / ls)
        elif nu == 1.5:
            z = d * (3.0 ** 0.5) / ls
            return sg ** 2 * (1 + z) * jnp.exp(-z)
        else:
            z = d * (5.0 ** 0.5) / ls
            return sg ** 2 * (1 + z + 5 * d ** 2 / (3 * ls ** 2)) * jnp.exp(-z)

    B, N, M = 2, 8, 8
    t1 = jnp.sort(jax.random.uniform(k1, (B, N), jnp.float32) * 10.0, axis=-1)
    t2 = jnp.sort(jax.random.uniform(k2, (B, M), jnp.float32) * 10.0, axis=-1)

    for nu in (0.5, 1.5, 2.5):
        mod = MaternKernel(nu=nu, lengthscale=1.5, sigma=0.8, epsilon=1e-3)

        # Unequal-inputs path: returns (K, None).
        K, Lnone = mod(t1, t2)
        K = jax.block_until_ready(K)
        assert K.shape == (B, N, M) and Lnone is None
        assert jnp.allclose(K, ref_matern(t1, t2, nu, 1.5, 0.8),
                            atol=1e-5, rtol=1e-5)

        # Equal-inputs path: adds epsilon*I and returns Cholesky factor.
        Keq, L = mod(t1, t1)
        jax.block_until_ready((Keq, L))
        assert Keq.shape == (B, N, N) and L.shape == (B, N, N)
        ref_eq = ref_matern(t1, t1, nu, 1.5, 0.8) + 1e-3 * jnp.eye(N)
        assert jnp.allclose(Keq, ref_eq, atol=1e-5, rtol=1e-5)

    # Multi-tile path: exercises the (N, M) grid, partial column blocks and the
    # block-diagonal epsilon gating, using small explicit tile sizes.
    Nt = 160
    tt = jnp.sort(jax.random.uniform(k1, (2, Nt), jnp.float32) * 10.0, axis=-1)
    params_15 = jnp.stack([jnp.float32(0.8 * 0.8),
                           jnp.float32(_SQRT3 / 1.5)])
    Kt = _matern_pallas(params_15, tt, tt, nu=1.5, epsilon=1e-3, add_eps=True,
                        tn=32, tm=128)
    Kt = jax.block_until_ready(Kt)
    ref_t = ref_matern(tt, tt, 1.5, 1.5, 0.8) + 1e-3 * jnp.eye(Nt)
    assert jnp.allclose(Kt, ref_t, atol=1e-5, rtol=1e-5)

    # Batch-blocking path with a partial batch block (B=3, TB=2).
    Bb = 3
    tb3 = jnp.sort(jax.random.uniform(k2, (Bb, N), jnp.float32) * 10.0, axis=-1)
    Kb = _matern_pallas(params_15, tb3, tb3, nu=1.5, epsilon=1e-3,
                        add_eps=True, tb=2)
    Kb = jax.block_until_ready(Kb)
    ref_b = ref_matern(tb3, tb3, 1.5, 1.5, 0.8) + 1e-3 * jnp.eye(N)
    assert jnp.allclose(Kb, ref_b, atol=1e-5, rtol=1e-5)

    # 1-D input path (single GP, no batch dims).
    mod = MaternKernel(nu=1.5)
    tv = jnp.linspace(0.0, 7.0, N, dtype=jnp.float32)
    Kv, Lv = mod(tv, tv)
    jax.block_until_ready((Kv, Lv))
    assert Kv.shape == (N, N) and Lv.shape == (N, N)

    print("KERNEL_OK")
</pallas_src>

<mosaic_0001>
module attributes {stable_mosaic.version = 11 : i64} {
  func.func @_matern_body(%arg0: i32, %arg1: i32, %arg2: i32, %arg3: memref<2xf32, #tpu.memory_space<smem>>, %arg4: memref<2x8x1xf32, #tpu.memory_space<vmem>>, %arg5: memref<2x1x8xf32, #tpu.memory_space<vmem>>, %arg6: memref<2x8x8xf32, #tpu.memory_space<vmem>>) attributes {dimension_semantics = [#tpu.dimension_semantics<parallel>, #tpu.dimension_semantics<parallel>, #tpu.dimension_semantics<parallel>], iteration_bounds = array<i64: 1, 1, 1>, scalar_prefetch = 0 : i64, scratch_operands = 0 : i64, tpu.core_type = #tpu.core_type<tc>, window_params = [{transform_indices = @transform_0, window_bounds = array<i64: 2>}, {transform_indices = @transform_1, window_bounds = array<i64: 2, 8, 1>}, {transform_indices = @transform_2, window_bounds = array<i64: 2, 1, 8>}, {transform_indices = @transform_3, window_bounds = array<i64: 2, 8, 8>}]} {
    %c0 = arith.constant 0 : index
    %0 = memref.load %arg3[%c0] : memref<2xf32, #tpu.memory_space<smem>>
    %c1 = arith.constant 1 : index
    %1 = memref.load %arg3[%c1] : memref<2xf32, #tpu.memory_space<smem>>
    %c0_0 = arith.constant 0 : index
    %c0_1 = arith.constant 0 : index
    %c0_2 = arith.constant 0 : index
    %2 = vector.load %arg4[%c0_0, %c0_1, %c0_2] : memref<2x8x1xf32, #tpu.memory_space<vmem>>, vector<2x8x1xf32>
    %c0_3 = arith.constant 0 : index
    %c0_4 = arith.constant 0 : index
    %c0_5 = arith.constant 0 : index
    %3 = vector.load %arg5[%c0_3, %c0_4, %c0_5] : memref<2x1x8xf32, #tpu.memory_space<vmem>>, vector<2x1x8xf32>
    %4 = vector.broadcast %2 : vector<2x8x1xf32> to vector<2x8x8xf32>
    %5 = vector.broadcast %3 : vector<2x1x8xf32> to vector<2x8x8xf32>
    %6 = arith.subf %4, %5 : vector<2x8x8xf32>
    %7 = math.absf %6 : vector<2x8x8xf32>
    %8 = vector.broadcast %1 : f32 to vector<2x8x8xf32>
    %9 = arith.mulf %7, %8 : vector<2x8x8xf32>
    %cst = arith.constant 0.000000e+00 : f32
    %10 = vector.broadcast %cst : f32 to vector<2x8x8xf32>
    %11 = arith.subf %10, %9 : vector<2x8x8xf32>
    %12 = math.exp %11 : vector<2x8x8xf32>
    %13 = vector.broadcast %0 : f32 to vector<2x8x8xf32>
    %14 = arith.mulf %13, %12 : vector<2x8x8xf32>
    %c0_6 = arith.constant 0 : index
    %c0_7 = arith.constant 0 : index
    %c0_8 = arith.constant 0 : index
    %15 = vector.load %arg6[%c0_6, %c0_7, %c0_8] : memref<2x8x8xf32, #tpu.memory_space<vmem>>, vector<2x8x8xf32>
    tpu.vector_store %arg6[%c0_6, %c0_7, %c0_8], %14 {strides = array<i32>} : memref<2x8x8xf32, #tpu.memory_space<vmem>>, vector<2x8x8xf32>,
    return
  }
  func.func @transform_0(%arg0: i32, %arg1: i32, %arg2: i32) -> i32 {
    %c0_i32 = arith.constant 0 : i32
    %c0_i32_0 = arith.constant 0 : i32
    return %c0_i32 : i32
  }
  func.func @transform_1(%arg0: i32, %arg1: i32, %arg2: i32) -> (i32, i32, i32) {
    %c0_i32 = arith.constant 0 : i32
    %c0_i32_0 = arith.constant 0 : i32
    return %arg0, %arg1, %c0_i32 : i32, i32, i32
  }
  func.func @transform_2(%arg0: i32, %arg1: i32, %arg2: i32) -> (i32, i32, i32) {
    %c0_i32 = arith.constant 0 : i32
    %c0_i32_0 = arith.constant 0 : i32
    return %arg0, %c0_i32, %arg2 : i32, i32, i32
  }
  func.func @transform_3(%arg0: i32, %arg1: i32, %arg2: i32) -> (i32, i32, i32) {
    %c0_i32 = arith.constant 0 : i32
    return %arg0, %arg1, %arg2 : i32, i32, i32
  }
}

</mosaic_0001>

<llo_original>
// kernel: tpu_custom_call.1
$region0: #{tpu_custom_call.1}
  #allocation0 [shape = 'u32[]', space=smem, size = 0x4, offset = 0x4, fixed_abs, tag = 'smem constant byte address 0x4 - core index']
  #allocation1 [shape = 'u32[72,128]{1,0:T(1,128)}', space=vmem, size = 0x9000, scoped, tag = 'internal scratch']
  %s0 = inlined_call_operand.vmem [shape: f32[2], index: 0, kind: input, shape index: {}]
  %s1 = inlined_call_operand.vmem [shape: f32[2,8,1], index: 1, kind: input, shape index: {}]
  %s2 = inlined_call_operand.vmem [shape: f32[2,1,8], index: 2, kind: input, shape index: {}]
  %s3 = inlined_call_operand.hbm [shape: f32[2,8,8], index: 3, kind: output, shape index: {}]
  %s4 = sld [smem:[#allocation0]]
  $region26: #{tpu_custom_call.1} parent=0
    _
  %s6 = ssub.s32 1, %s4
  %s7 = scalar_select 0, %s6, %s4
  $region1: #{tpu_custom_call.1} parent=0
    #allocation2 [shape = 'u8[512]{0}', space=smem, size = 0x200, scoped, tag = 'input window, operand 0, single buffered']
    #allocation3 [shape = 's32[1]{0}', space=sflag, size = 0x4, scoped, tag = 'scoped memory for tpu_custom_call.1']
    #allocation4 [shape = 's32[1]{0}', space=sflag, size = 0x4, scoped, tag = 'scoped memory for tpu_custom_call.1']
    #allocation5 [shape = 'u8[8192]{0}', space=vmem, size = 0x2000, scoped, tag = 'output window, operand 0, single buffered']
    %8 = vsyncpa [#allocation4], 0
    %9 = vsyncpa [#allocation3], 0
    // Predicated region
    $region2: #{tpu_custom_call.1} parent=1 // pred_check
      _
    $region3: #{tpu_custom_call.1} parent=1 // pred_check_branch
      %11 = sbr.rel (0) target = $region5
    $region4: #{tpu_custom_call.1} parent=1 // pred_region
      %13 = vsyncadd [#allocation4], 0
      %s15 = sshll.u32 %s0, 4
      %s16 = int_to_ptr.vmem [resolvable:$true] %s15
      %18 = dma.vmem_to_smem %s16, 16, [#allocation2], [#allocation4]
    $region5: #{tpu_custom_call.1} parent=1 // pred_fallthru
      _
    // Predicated region
    $region6: #{tpu_custom_call.1} parent=1 // pred_check
      _
    $region7: #{tpu_custom_call.1} parent=1 // pred_check_branch
      %20 = sbr.rel (0) target = $region9
    $region8: #{tpu_custom_call.1} parent=1 // pred_region
      _
    $region9: #{tpu_custom_call.1} parent=1 // pred_fallthru
      _
    // Predicated region
    $region10: #{tpu_custom_call.1} parent=1 // pred_check
      _
    $region11: #{tpu_custom_call.1} parent=1 // pred_check_branch
      %22 = sbr.rel (0) target = $region13
    $region12: #{tpu_custom_call.1} parent=1 // pred_region
      _
    $region13: #{tpu_custom_call.1} parent=1 // pred_fallthru
      _
    // Predicated region
    $region14: #{tpu_custom_call.1} parent=1 // pred_check
      _
    $region15: #{tpu_custom_call.1} parent=1 // pred_check_branch
      %24 = sbr.rel (0) target = $region17
    $region16: #{tpu_custom_call.1} parent=1 // pred_region
      %26 = dma.done [#allocation4], 16
    $region17: #{tpu_custom_call.1} parent=1 // pred_fallthru
      _
    %27 = sfence
    %s28 = sld [smem:[#allocation2]]
    %s29 = sld [smem:[#allocation2 + $0x1]]
    %v30 = vld [vmem:[%s1] sm:$0xff]
    %v31 = vld [vmem:[%s1 + $0x8] sm:$0xff]
    %v32 = vld [vmem:[%s2] sm:$0x1]
    %v33 = vld [vmem:[%s2 + $0x1] sm:$0x1]
    %35 = vset.pattern.permute.xlu0 0
    %36 = vperm.xlu0 %35, %v30
    %v37 = vpop.permute.xlu0 %36
    %40 = vset.pattern.permute.xlu0 0
    %41 = vperm.xlu0 %40, %v31
    %v42 = vpop.permute.xlu0 %41
    %v46 = vperm.slane %v32, 0
    %v47 = vperm.slane %v33, 0
    %v50 = vsub.f32 %v37, %v46
    %v51 = vsub.f32 %v42, %v47
    %v52 = vand.u32 2147483647, %v50
    %v53 = vand.u32 2147483647, %v51
    %v54 = vstv %s29
    %v55 = vmul.f32 %v52, %v54
    %v56 = vmul.f32 %v53, %v54
    %v57 = vsub.f32 0.0, %v55
    %v58 = vsub.f32 0.0, %v56
    %v59 = vmul.f32 %v57, 1.442695
    %v60 = vpow.pop %v59
    %v61 = vmul.f32 %v58, 1.442695
    %v62 = vpow.pop %v61
    %v63 = vstv %s28
    %v64 = vmul.f32 %v63, %v60
    %v65 = vmul.f32 %v63, %v62
    %vm66 = vcmask 64512
    %67 = vst.msk [vmem:[#allocation5] sm:$0xff] %vm66, %v64
    %68 = vst.msk [vmem:[#allocation5 + $0x8] sm:$0xff] %vm66, %v65
    // Predicated region
    $region18: #{tpu_custom_call.1} parent=1 // pred_check
      _
    $region19: #{tpu_custom_call.1} parent=1 // pred_check_branch
      %70 = sbr.rel (0) target = $region21
    $region20: #{tpu_custom_call.1} parent=1 // pred_region
      %72 = vsyncadd [#allocation3], 0
      %s73 = sshll.u32 [#allocation5], 4
      %s74 = int_to_ptr.vmem [resolvable:$true] %s73
      %s75 = sshll.u32 %s3, 4
      %s76 = int_to_ptr.hbm [resolvable:$true] %s75
      %81 = dma.vmem_to_hbm [thread:$0]  %s74, 256, %s76, [#allocation3], 128, 128, 8
    $region21: #{tpu_custom_call.1} parent=1 // pred_fallthru
      _
    // Predicated region
    $region22: #{tpu_custom_call.1} parent=1 // pred_check
      _
    $region23: #{tpu_custom_call.1} parent=1 // pred_check_branch
      %83 = sbr.rel (0) target = $region25
    $region24: #{tpu_custom_call.1} parent=1 // pred_region
      %85 = dma.done [#allocation3], 256
    $region25: #{tpu_custom_call.1} parent=1 // pred_fallthru
      _
    %86 = vsyncpa [#allocation3], 1
    %87 = vsyncpa [#allocation4], 1

</llo_original>
